<compile_context>
chip_gen: v7x
topology: tpu7x:2x2x1
jax: 0.10.0
libtpu: 0.0.40
codegen_flags: <defaults>
</compile_context>

<pallas_src>
import functools

import jax
import jax.numpy as jnp
from jax import lax
from jax.experimental import pallas as pl
from jax.experimental.pallas import tpu as pltpu


# ---------------------------------------------------------------------------
# VMEM budget (generation aware)
# ---------------------------------------------------------------------------
def _vmem_budget_bytes():
    cap = 64 * 1024 * 1024  # conservative fallback (v7x-sized)
    try:
        info = pltpu.get_tpu_info()
        cap = int(getattr(info, "vmem_capacity_bytes", cap))
    except Exception:
        pass
    # Leave ~25% headroom for compiler-internal scratch and pipelining:
    # 128 MiB parts (v5e/v6e) -> ~96 MiB, 64 MiB parts (v7x) -> ~48 MiB.
    return (cap * 3) // 4


def _fused_batch_tile(B, M, F, out_itemsize, budget):
    """Largest batch tile whose fused-kernel footprint fits the VMEM budget."""
    cands = sorted(
        {t for t in (1024, 512, 256, 128, 64, 32, 16, 8) if B % t == 0} | {B},
        reverse=True,
    )
    for tb in cands:
        bank = 2 * M * F * 2                 # bf16 bank (assume double-buffered)
        zin = 2 * tb * F * 2                 # bf16 z tile (dbuf)
        zout = 2 * tb * F * out_itemsize     # z_hat tile (dbuf)
        wout = 2 * tb * M * 4                # weight tile (dbuf)
        mn = 2 * M * 4                       # bank norms
        live = tb * F * 4 + 8 * tb * M * 4   # in-body f32 temporaries
        if bank + zin + zout + wout + mn + live <= budget:
            return tb
    return None


def _tiled_f_tile(B, M, F, out_itemsize, budget, max_tile_f=None):
    """Largest F tile for the streamed fallback that fits the VMEM budget."""
    cands = {t for t in (4096, 2048, 1024, 512, 256, 128) if F % t == 0} | {F}
    if max_tile_f is not None:
        filtered = {t for t in cands if t <= max_tile_f}
        cands = filtered or {min(cands)}
    cands = sorted(cands, reverse=True)
    for tf in cands:
        bank = 2 * M * tf * 2                # bf16 bank tile (dbuf)
        zin = 2 * B * tf * 2                 # bf16 z tile (dbuf)
        acc = B * M * 4 + B * 4              # dots / ||z||^2 accumulators
        wout = 2 * B * M * 4
        zout = 2 * B * tf * out_itemsize
        live = B * tf * 4 + 8 * B * M * 4
        if bank + zin + acc + wout + zout + live <= budget:
            return tf
    return cands[-1]


# ---------------------------------------------------------------------------
# Fused kernel: bank resident in VMEM, everything in one body.
# ---------------------------------------------------------------------------
def _fused_kernel(z_ref, mem_ref, mnorm_ref, zhat_ref, w_ref, *, mem_dim):
    z = z_ref[...]                                    # (TB, F) bf16
    mem = mem_ref[...]                                # (M, F)  bf16 (fetched once)

    # Similarity numerator on the MXU: bf16 x bf16 -> f32.
    dots = lax.dot_general(
        z, mem,
        dimension_numbers=(((1,), (1,)), ((), ())),
        preferred_element_type=jnp.float32,
    )                                                 # (TB, M)

    z32 = z.astype(jnp.float32)
    z_norm = jnp.sqrt(jnp.sum(z32 * z32, axis=-1, keepdims=True))   # (TB, 1)
    m_norm = mnorm_ref[...]                                         # (1, M) f32

    # CosineSimilarity(dim=2, eps=1e-8): dot / max(|z| * |m|, eps)
    sim = dots / jnp.maximum(z_norm * m_norm, 1e-8)

    # softmax over MEM_DIM (exact division: epilogue is O(B*M), negligible)
    e = jnp.exp(sim - jnp.max(sim, axis=-1, keepdims=True))
    w = e / jnp.sum(e, axis=-1, keepdims=True)

    # sparse addressing: relu(w - 1/M) * w / (|w - 1/M| + 1e-12), then L1 norm
    d = w - (1.0 / mem_dim)
    w = jnp.maximum(d, 0.0) * w / (jnp.abs(d) + 1e-12)
    w = w / jnp.maximum(jnp.sum(w, axis=-1, keepdims=True), 1e-12)

    w_ref[...] = w.astype(w_ref.dtype)

    # Readout reuses the VMEM-resident bank: bf16 x bf16 MXU path.
    zhat_ref[...] = jnp.dot(
        w.astype(jnp.bfloat16), mem, preferred_element_type=jnp.float32
    ).astype(zhat_ref.dtype)


# ---------------------------------------------------------------------------
# Tiled fallback, pass 1: accumulate dots / ||z||^2 over F tiles -> weights.
# Grid = (num_F_tiles,) so the bank is streamed exactly once.
# ---------------------------------------------------------------------------
def _weights_kernel(z_ref, mem_ref, mnorm_ref, w_ref, dots_acc, znorm_acc, *,
                    mem_dim):
    k = pl.program_id(0)

    @pl.when(k == 0)
    def _():
        dots_acc[...] = jnp.zeros_like(dots_acc)
        znorm_acc[...] = jnp.zeros_like(znorm_acc)

    z = z_ref[...]                                    # (B, TF) bf16
    dots_acc[...] += lax.dot_general(
        z, mem_ref[...],
        dimension_numbers=(((1,), (1,)), ((), ())),
        preferred_element_type=jnp.float32,
    )                                                 # (B, M)
    z32 = z.astype(jnp.float32)
    znorm_acc[...] += jnp.sum(z32 * z32, axis=-1, keepdims=True)

    @pl.when(k == pl.num_programs(0) - 1)
    def _():
        z_norm = jnp.sqrt(znorm_acc[...])             # (B, 1)
        m_norm = mnorm_ref[...]                       # (1, M)
        sim = dots_acc[...] / jnp.maximum(z_norm * m_norm, 1e-8)

        e = jnp.exp(sim - jnp.max(sim, axis=-1, keepdims=True))
        w = e / jnp.sum(e, axis=-1, keepdims=True)

        d = w - (1.0 / mem_dim)
        w = jnp.maximum(d, 0.0) * w / (jnp.abs(d) + 1e-12)
        w = w / jnp.maximum(jnp.sum(w, axis=-1, keepdims=True), 1e-12)

        w_ref[...] = w.astype(w_ref.dtype)


# ---------------------------------------------------------------------------
# Tiled fallback, pass 2: z_hat[:, f_tile] = w @ mem[:, f_tile] (bf16 MXU).
# Grid = (num_F_tiles,) -> bank streamed once; w block constant.
# ---------------------------------------------------------------------------
def _readout_kernel(w_ref, mem_ref, zhat_ref):
    zhat_ref[...] = jnp.dot(
        w_ref[...], mem_ref[...], preferred_element_type=jnp.float32
    ).astype(zhat_ref.dtype)


# ---------------------------------------------------------------------------
# Host-side wrappers
# ---------------------------------------------------------------------------
def prepare_memory(memory_f32):
    """One-time preprocessing per bank update: bf16 bank + f32 row norms.

    Norms are computed from the *bf16-rounded* bank so the cosine numerator
    and denominator see the same matrix. Cache these across forward calls.
    """
    mem_bf16 = jnp.asarray(memory_f32, jnp.float32).astype(jnp.bfloat16)
    m32 = mem_bf16.astype(jnp.float32)
    m_norm = jnp.sqrt(jnp.sum(m32 * m32, axis=-1)).reshape(1, -1)
    return mem_bf16, m_norm


def memory_forward(x, mem_bf16, m_norm, *, force_tiled=False, max_tile_f=None):
    """x: (B, C, H, W). mem_bf16: (M, F) bfloat16. m_norm: (1, M) float32.

    Returns (out with x.shape, mem_weight (B, M) float32).
    """
    B = x.shape[0]
    out_dtype = x.dtype
    out_itemsize = jnp.dtype(out_dtype).itemsize
    z = x.reshape(B, -1).astype(jnp.bfloat16)   # same flattening as torch view
    F = z.shape[1]
    M, Fm = mem_bf16.shape
    assert F == Fm, "feature dim mismatch"
    m_norm = jnp.asarray(m_norm, jnp.float32).reshape(1, M)

    budget = _vmem_budget_bytes()

    tb = None if force_tiled else _fused_batch_tile(B, M, F, out_itemsize, budget)

    if tb is not None:
        # ------------------------- fused path --------------------------
        nb = B // tb
        cost = pl.CostEstimate(
            flops=4 * B * M * F + 12 * B * M,
            transcendentals=B * M,
            bytes_accessed=M * F * 2 + B * F * 2 + B * F * out_itemsize
            + B * M * 4 + M * 4,
        )
        z_hat, w = pl.pallas_call(
            functools.partial(_fused_kernel, mem_dim=M),
            grid=(nb,),
            in_specs=[
                pl.BlockSpec((tb, F), lambda i: (i, 0)),   # z (bf16)
                pl.BlockSpec((M, F), lambda i: (0, 0)),    # bank, constant index
                pl.BlockSpec((1, M), lambda i: (0, 0)),    # bank row norms
            ],
            out_specs=[
                pl.BlockSpec((tb, F), lambda i: (i, 0)),   # z_hat
                pl.BlockSpec((tb, M), lambda i: (i, 0)),   # weights
            ],
            out_shape=(
                jax.ShapeDtypeStruct((B, F), out_dtype),
                jax.ShapeDtypeStruct((B, M), jnp.float32),
            ),
            compiler_params=pltpu.CompilerParams(
                dimension_semantics=("parallel",),
                vmem_limit_bytes=budget,
            ),
            cost_estimate=cost,
        )(z, mem_bf16, m_norm)
        return z_hat.reshape(x.shape), w

    # --------------------------- tiled fallback -------------------------
    # TODO(synk): if B*M*4 itself exceeds the VMEM budget (huge batch), the
    # full-batch accumulator below would need batch tiling with F outermost.
    tf = _tiled_f_tile(B, M, F, out_itemsize, budget, max_tile_f=max_tile_f)
    nf = F // tf

    cost_w = pl.CostEstimate(
        flops=2 * B * M * F + 12 * B * M,
        transcendentals=B * M,
        bytes_accessed=M * F * 2 + B * F * 2 + B * M * 4 + M * 4,
    )
    w = pl.pallas_call(
        functools.partial(_weights_kernel, mem_dim=M),
        grid=(nf,),
        in_specs=[
            pl.BlockSpec((B, tf), lambda k: (0, k)),   # z (bf16)
            pl.BlockSpec((M, tf), lambda k: (0, k)),   # bank tile (bf16)
            pl.BlockSpec((1, M), lambda k: (0, 0)),    # bank row norms
        ],
        out_specs=pl.BlockSpec((B, M), lambda k: (0, 0)),
        out_shape=jax.ShapeDtypeStruct((B, M), jnp.float32),
        scratch_shapes=[
            pltpu.VMEM((B, M), jnp.float32),   # dots accumulator
            pltpu.VMEM((B, 1), jnp.float32),   # ||z||^2 accumulator
        ],
        compiler_params=pltpu.CompilerParams(
            dimension_semantics=("arbitrary",),
            vmem_limit_bytes=budget,
        ),
        cost_estimate=cost_w,
    )(z, mem_bf16, m_norm)

    cost_r = pl.CostEstimate(
        flops=2 * B * M * F,
        transcendentals=0,
        bytes_accessed=M * F * 2 + B * M * 2 + B * F * out_itemsize,
    )
    z_hat = pl.pallas_call(
        _readout_kernel,
        grid=(nf,),
        in_specs=[
            pl.BlockSpec((B, M), lambda j: (0, 0)),    # weights (bf16), constant
            pl.BlockSpec((M, tf), lambda j: (0, j)),   # bank tile (bf16)
        ],
        out_specs=pl.BlockSpec((B, tf), lambda j: (0, j)),
        out_shape=jax.ShapeDtypeStruct((B, F), out_dtype),
        compiler_params=pltpu.CompilerParams(
            dimension_semantics=("parallel",),
            vmem_limit_bytes=budget,
        ),
        cost_estimate=cost_r,
    )(w.astype(jnp.bfloat16), mem_bf16)

    return z_hat.reshape(x.shape), w


def init_memory(key, mem_dim, features):
    """kaiming_uniform_ for a (mem_dim, features) matrix: bound = sqrt(6/fan_in)."""
    bound = (6.0 / features) ** 0.5
    return jax.random.uniform(
        key, (mem_dim, features), dtype=jnp.float32, minval=-bound, maxval=bound
    )


def _reference(x, mem_bf16):
    """Pure-JAX reference on the same bf16-rounded operands (f32 math)."""
    B = x.shape[0]
    z = x.reshape(B, -1).astype(jnp.bfloat16).astype(jnp.float32)
    m = mem_bf16.astype(jnp.float32)
    M = m.shape[0]
    zn = jnp.sqrt(jnp.sum(z * z, axis=1, keepdims=True))
    mn = jnp.sqrt(jnp.sum(m * m, axis=1, keepdims=True))
    sim = (z @ m.T) / jnp.maximum(zn * mn.T, 1e-8)
    w = jax.nn.softmax(sim, axis=1)
    d = w - 1.0 / M
    w = jnp.maximum(d, 0.0) * w / (jnp.abs(d) + 1e-12)
    w = w / jnp.maximum(jnp.sum(jnp.abs(w), axis=1, keepdims=True), 1e-12)
    z_hat = w @ m
    return z_hat.reshape(x.shape).astype(x.dtype), w


if __name__ == "__main__":
    # Small shapes consistent with the module: x is (B, C, H, W), F = C*H*W.
    B, C, H, W = 2, 4, 16, 16
    MEM_DIM = 128
    FEATURES = C * H * W  # 1024

    key = jax.random.PRNGKey(0)
    kx, km = jax.random.split(key)
    x = jax.random.normal(kx, (B, C, H, W), dtype=jnp.float32)
    memory = init_memory(km, MEM_DIM, FEATURES)

    mem_bf16, m_norm = prepare_memory(memory)

    # Fused path (bank resident in VMEM, streamed from HBM once).
    out, mem_weight = memory_forward(x, mem_bf16, m_norm)
    # Tiled fallback path, forced with nf > 1, to exercise the streamed kernels.
    out_t, mem_weight_t = memory_forward(
        x, mem_bf16, m_norm, force_tiled=True, max_tile_f=256
    )
    jax.block_until_ready((out, mem_weight, out_t, mem_weight_t))

    out_ref, w_ref = _reference(x, mem_bf16)

    assert out.shape == x.shape
    assert mem_weight.shape == (B, MEM_DIM)
    assert bool(jnp.all(jnp.isfinite(out)))
    assert bool(jnp.all(jnp.isfinite(mem_weight)))
    # sparse weights are non-negative and L1-normalized -> rows sum to 1
    assert bool(jnp.all(mem_weight >= 0.0))
    row_sums = jnp.sum(mem_weight, axis=1)
    assert bool(jnp.all(jnp.abs(row_sums - 1.0) < 1e-3)), row_sums
    # kernel vs pure-JAX reference (same bf16-rounded operands)
    assert bool(jnp.max(jnp.abs(mem_weight - w_ref)) < 3e-2)
    assert bool(jnp.max(jnp.abs(out - out_ref)) < 1e-2)
    # fused vs streamed-fallback agreement
    assert bool(jnp.max(jnp.abs(mem_weight - mem_weight_t)) < 3e-2)
    assert bool(jnp.max(jnp.abs(out - out_t)) < 1e-2)
    print("KERNEL_OK")
</pallas_src>

<mosaic_0001>
module attributes {stable_mosaic.version = 11 : i64} {
  func.func @_fused_kernel(%arg0: i32, %arg1: memref<2x1024xbf16, #tpu.memory_space<vmem>>, %arg2: memref<128x1024xbf16, #tpu.memory_space<vmem>>, %arg3: memref<1x128xf32, #tpu.memory_space<vmem>>, %arg4: memref<2x1024xf32, #tpu.memory_space<vmem>>, %arg5: memref<2x128xf32, #tpu.memory_space<vmem>>) attributes {dimension_semantics = [#tpu.dimension_semantics<parallel>], iteration_bounds = array<i64: 1>, scalar_prefetch = 0 : i64, scratch_operands = 0 : i64, tpu.core_type = #tpu.core_type<tc>, window_params = [{transform_indices = @transform_0, window_bounds = array<i64: 2, 1024>}, {pipeline_mode = #tpu.pipeline_mode<synchronous>, transform_indices = @transform_1, window_bounds = array<i64: 128, 1024>}, {pipeline_mode = #tpu.pipeline_mode<synchronous>, transform_indices = @transform_2, window_bounds = array<i64: 1, 128>}, {transform_indices = @transform_3, window_bounds = array<i64: 2, 1024>}, {transform_indices = @transform_4, window_bounds = array<i64: 2, 128>}]} {
    %c0 = arith.constant 0 : index
    %c0_0 = arith.constant 0 : index
    %0 = vector.load %arg1[%c0, %c0_0] : memref<2x1024xbf16, #tpu.memory_space<vmem>>, vector<2x1024xbf16>
    %c0_1 = arith.constant 0 : index
    %c0_2 = arith.constant 0 : index
    %1 = vector.load %arg2[%c0_1, %c0_2] : memref<128x1024xbf16, #tpu.memory_space<vmem>>, vector<128x1024xbf16>
    %cst = arith.constant dense<0.000000e+00> : vector<2x128xf32>
    %2 = tpu.matmul %0, %1, %cst {dimension_numbers = #tpu.dot_dimension_numbers<[1], [1], [0], [0], [0, 0, 1, 0], [], []>} : vector<2x1024xbf16>, vector<128x1024xbf16>, vector<2x128xf32> -> vector<2x128xf32>
    %3 = arith.extf %0 : vector<2x1024xbf16> to vector<2x1024xf32>
    %4 = arith.mulf %3, %3 : vector<2x1024xf32>
    %cst_3 = arith.constant dense<0.000000e+00> : vector<2xf32>
    %5 = vector.multi_reduction <add>, %4, %cst_3 [1] : vector<2x1024xf32> to vector<2xf32>
    %6 = vector.shape_cast %5 : vector<2xf32> to vector<2x1xf32>
    %7 = math.sqrt %6 : vector<2x1xf32>
    %c0_4 = arith.constant 0 : index
    %c0_5 = arith.constant 0 : index
    %8 = vector.load %arg3[%c0_4, %c0_5] : memref<1x128xf32, #tpu.memory_space<vmem>>, vector<1x128xf32>
    %9 = vector.broadcast %7 : vector<2x1xf32> to vector<2x128xf32>
    %10 = vector.broadcast %8 : vector<1x128xf32> to vector<2x128xf32>
    %11 = arith.mulf %9, %10 : vector<2x128xf32>
    %cst_6 = arith.constant 9.99999993E-9 : f32
    %12 = vector.broadcast %cst_6 : f32 to vector<2x128xf32>
    %13 = arith.maximumf %11, %12 : vector<2x128xf32>
    %14 = arith.divf %2, %13 : vector<2x128xf32>
    %cst_7 = arith.constant dense<0xFF800000> : vector<2xf32>
    %15 = vector.multi_reduction <maximumf>, %14, %cst_7 [1] : vector<2x128xf32> to vector<2xf32>
    %16 = vector.shape_cast %15 : vector<2xf32> to vector<2x1xf32>
    %17 = vector.broadcast %16 : vector<2x1xf32> to vector<2x128xf32>
    %18 = arith.subf %14, %17 : vector<2x128xf32>
    %19 = math.exp %18 : vector<2x128xf32>
    %cst_8 = arith.constant dense<0.000000e+00> : vector<2xf32>
    %20 = vector.multi_reduction <add>, %19, %cst_8 [1] : vector<2x128xf32> to vector<2xf32>
    %21 = vector.shape_cast %20 : vector<2xf32> to vector<2x1xf32>
    %22 = vector.broadcast %21 : vector<2x1xf32> to vector<2x128xf32>
    %23 = arith.divf %19, %22 : vector<2x128xf32>
    %cst_9 = arith.constant 7.812500e-03 : f32
    %24 = vector.broadcast %cst_9 : f32 to vector<2x128xf32>
    %25 = arith.subf %23, %24 : vector<2x128xf32>
    %cst_10 = arith.constant 0.000000e+00 : f32
    %26 = vector.broadcast %cst_10 : f32 to vector<2x128xf32>
    %27 = arith.maximumf %25, %26 : vector<2x128xf32>
    %28 = arith.mulf %27, %23 : vector<2x128xf32>
    %29 = math.absf %25 : vector<2x128xf32>
    %cst_11 = arith.constant 9.99999996E-13 : f32
    %30 = vector.broadcast %cst_11 : f32 to vector<2x128xf32>
    %31 = arith.addf %29, %30 : vector<2x128xf32>
    %32 = arith.divf %28, %31 : vector<2x128xf32>
    %cst_12 = arith.constant dense<0.000000e+00> : vector<2xf32>
    %33 = vector.multi_reduction <add>, %32, %cst_12 [1] : vector<2x128xf32> to vector<2xf32>
    %34 = vector.shape_cast %33 : vector<2xf32> to vector<2x1xf32>
    %cst_13 = arith.constant 9.99999996E-13 : f32
    %35 = vector.broadcast %cst_13 : f32 to vector<2x1xf32>
    %36 = arith.maximumf %34, %35 : vector<2x1xf32>
    %37 = vector.broadcast %36 : vector<2x1xf32> to vector<2x128xf32>
    %38 = arith.divf %32, %37 : vector<2x128xf32>
    %c0_14 = arith.constant 0 : index
    %c0_15 = arith.constant 0 : index
    %39 = vector.load %arg5[%c0_14, %c0_15] : memref<2x128xf32, #tpu.memory_space<vmem>>, vector<2x128xf32>
    tpu.vector_store %arg5[%c0_14, %c0_15], %38 {strides = array<i32>} : memref<2x128xf32, #tpu.memory_space<vmem>>, vector<2x128xf32>,
    %40 = arith.truncf %38 : vector<2x128xf32> to vector<2x128xbf16>
    %cst_16 = arith.constant dense<0.000000e+00> : vector<2x1024xf32>
    %41 = tpu.matmul %40, %1, %cst_16 {dimension_numbers = #tpu.dot_dimension_numbers<[1], [0], [0], [1], [0, 0, 1, 1], [], []>} : vector<2x128xbf16>, vector<128x1024xbf16>, vector<2x1024xf32> -> vector<2x1024xf32>
    %c0_17 = arith.constant 0 : index
    %c0_18 = arith.constant 0 : index
    %42 = vector.load %arg4[%c0_17, %c0_18] : memref<2x1024xf32, #tpu.memory_space<vmem>>, vector<2x1024xf32>
    tpu.vector_store %arg4[%c0_17, %c0_18], %41 {strides = array<i32>} : memref<2x1024xf32, #tpu.memory_space<vmem>>, vector<2x1024xf32>,
    return
  }
  func.func @transform_0(%arg0: i32) -> (i32, i32) {
    %c0_i32 = arith.constant 0 : i32
    %c0_i32_0 = arith.constant 0 : i32
    return %arg0, %c0_i32 : i32, i32
  }
  func.func @transform_1(%arg0: i32) -> (i32, i32) {
    %c0_i32 = arith.constant 0 : i32
    %c0_i32_0 = arith.constant 0 : i32
    %c0_i32_1 = arith.constant 0 : i32
    return %c0_i32, %c0_i32_0 : i32, i32
  }
  func.func @transform_2(%arg0: i32) -> (i32, i32) {
    %c0_i32 = arith.constant 0 : i32
    %c0_i32_0 = arith.constant 0 : i32
    %c0_i32_1 = arith.constant 0 : i32
    return %c0_i32, %c0_i32_0 : i32, i32
  }
  func.func @transform_3(%arg0: i32) -> (i32, i32) {
    %c0_i32 = arith.constant 0 : i32
    %c0_i32_0 = arith.constant 0 : i32
    return %arg0, %c0_i32 : i32, i32
  }
  func.func @transform_4(%arg0: i32) -> (i32, i32) {
    %c0_i32 = arith.constant 0 : i32
    %c0_i32_0 = arith.constant 0 : i32
    return %arg0, %c0_i32 : i32, i32
  }
}

</mosaic_0001>

<llo_original>
// kernel: tpu_custom_call.1
$region0: #{tpu_custom_call.1}
  #allocation0 [shape = 'u32[]', space=smem, size = 0x4, offset = 0x4, fixed_abs, tag = 'smem constant byte address 0x4 - core index']
  #allocation1 [shape = 'u32[144,128]{1,0:T(1,128)}', space=vmem, size = 0x12000, scoped, tag = 'internal scratch']
  %s0 = inlined_call_operand.hbm [shape: bf16[2,1024], index: 0, kind: input, shape index: {}]
  %s1 = inlined_call_operand.hbm [shape: bf16[128,1024], index: 1, kind: input, shape index: {}]
  %s2 = inlined_call_operand.vmem [shape: f32[1,128], index: 2, kind: input, shape index: {}]
  %s3 = inlined_call_operand.hbm [shape: f32[2,1024], index: 3, kind: output, shape index: {0}]
  %s4 = inlined_call_operand.hbm [shape: f32[2,128], index: 4, kind: output, shape index: {1}]
  %5 = xla_tuple %s3, %s4
  %s6 = sld [smem:[#allocation0]]
  $region38: #{tpu_custom_call.1} parent=0
    _
  %s8 = ssub.s32 1, %s6
  %s9 = scalar_select 0, %s8, %s6
  $region1: #{tpu_custom_call.1} parent=0
    #allocation2 [shape = 'u8[4096]{0}', space=vmem, size = 0x1000, scoped, tag = 'input window, operand 0, single buffered']
    #allocation3 [shape = 's32[1]{0}', space=sflag, size = 0x4, scoped, tag = 'scoped memory for tpu_custom_call.1']
    #allocation4 [shape = 's32[1]{0}', space=sflag, size = 0x4, scoped, tag = 'scoped memory for tpu_custom_call.1']
    #allocation5 [shape = 'u8[262144]{0}', space=vmem, size = 0x40000, scoped, tag = 'input window, operand 1, single buffered']
    #allocation6 [shape = 's32[1]{0}', space=sflag, size = 0x4, scoped, tag = 'scoped memory for tpu_custom_call.1']
    #allocation7 [shape = 'u8[8192]{0}', space=vmem, size = 0x2000, scoped, tag = 'output window, operand 0, single buffered']
    #allocation8 [shape = 'u8[1024]{0}', space=vmem, size = 0x400, scoped, tag = 'output window, operand 1, single buffered']
    #allocation9 [shape = 's32[1]{0}', space=sflag, size = 0x4, scoped, tag = 'scoped memory for tpu_custom_call.1']
    %10 = vsyncpa [#allocation3], 0
    %11 = vsyncpa [#allocation6], 0
    %12 = vsyncpa [#allocation4], 0
    %13 = vsyncpa [#allocation9], 0
    // Predicated region
    $region2: #{tpu_custom_call.1} parent=1 // pred_check
      _
    $region3: #{tpu_custom_call.1} parent=1 // pred_check_branch
      %15 = sbr.rel (0) target = $region5
    $region4: #{tpu_custom_call.1} parent=1 // pred_region
      %s17 = ssub.s32 128, 128
      %18 = vsyncadd [#allocation3], %s17
      %s20 = sshll.u32 [#allocation2], 4
      %s21 = int_to_ptr.vmem [resolvable:$true] %s20
      %23 = dma.hbm_to_vmem [thread:$0]  %s0, 128, %s21, [#allocation3]
    $region5: #{tpu_custom_call.1} parent=1 // pred_fallthru
      _
    // Predicated region
    $region6: #{tpu_custom_call.1} parent=1 // pred_check
      _
    $region7: #{tpu_custom_call.1} parent=1 // pred_check_branch
      %25 = sbr.rel (0) target = $region9
    $region8: #{tpu_custom_call.1} parent=1 // pred_region
      %s27 = ssub.s32 8192, 8192
      %28 = vsyncadd [#allocation6], %s27
      %s29 = sshll.u32 [#allocation5], 4
      %s30 = int_to_ptr.vmem [resolvable:$true] %s29
      %35 = dma.hbm_to_vmem [thread:$0]  %s1, 8192, %s30, [#allocation6], 512, 512, 32
    $region9: #{tpu_custom_call.1} parent=1 // pred_fallthru
      _
    // Predicated region
    $region10: #{tpu_custom_call.1} parent=1 // pred_check
      _
    $region11: #{tpu_custom_call.1} parent=1 // pred_check_branch
      %37 = sbr.rel (0) target = $region13
    $region12: #{tpu_custom_call.1} parent=1 // pred_region
      _
    $region13: #{tpu_custom_call.1} parent=1 // pred_fallthru
      _
    // Predicated region
    $region14: #{tpu_custom_call.1} parent=1 // pred_check
      _
    $region15: #{tpu_custom_call.1} parent=1 // pred_check_branch
      %39 = sbr.rel (0) target = $region17
    $region16: #{tpu_custom_call.1} parent=1 // pred_region
      %40 = dma.done [#allocation3], 128
    $region17: #{tpu_custom_call.1} parent=1 // pred_fallthru
      _
    // Predicated region
    $region18: #{tpu_custom_call.1} parent=1 // pred_check
      _
    $region19: #{tpu_custom_call.1} parent=1 // pred_check_branch
      %42 = sbr.rel (0) target = $region21
    $region20: #{tpu_custom_call.1} parent=1 // pred_region
      %43 = dma.done [#allocation6], 8192
    $region21: #{tpu_custom_call.1} parent=1 // pred_fallthru
      _
    %v45 = vld [vmem:[#allocation2] sm:$0xff]
    %v46 = vld [vmem:[#allocation5] sm:$0xff]
    %v47 = vld [vmem:[#allocation5 + $0x8] sm:$0xff]
    %v48 = vld [vmem:[#allocation5 + $0x10] sm:$0xff]
    %v49 = vld [vmem:[#allocation5 + $0x18] sm:$0xff]
    %v50 = vld [vmem:[#allocation5 + $0x20] sm:$0xff]
    %v51 = vld [vmem:[#allocation5 + $0x28] sm:$0xff]
    %v52 = vld [vmem:[#allocation5 + $0x30] sm:$0xff]
    %v53 = vld [vmem:[#allocation5 + $0x38] sm:$0xff]
    %v54 = vld [vmem:[#allocation5 + $0x40] sm:$0xff]
    %v55 = vld [vmem:[#allocation5 + $0x48] sm:$0xff]
    %v56 = vld [vmem:[#allocation5 + $0x50] sm:$0xff]
    %v57 = vld [vmem:[#allocation5 + $0x58] sm:$0xff]
    %v58 = vld [vmem:[#allocation5 + $0x60] sm:$0xff]
    %v59 = vld [vmem:[#allocation5 + $0x68] sm:$0xff]
    %v60 = vld [vmem:[#allocation5 + $0x70] sm:$0xff]
    %v61 = vld [vmem:[#allocation5 + $0x78] sm:$0xff]
    %v62 = vld [vmem:[#allocation5 + $0x80] sm:$0xff]
    %v63 = vld [vmem:[#allocation5 + $0x88] sm:$0xff]
    %v64 = vld [vmem:[#allocation5 + $0x90] sm:$0xff]
    %v65 = vld [vmem:[#allocation5 + $0x98] sm:$0xff]
    %v66 = vld [vmem:[#allocation5 + $0xa0] sm:$0xff]
    %v67 = vld [vmem:[#allocation5 + $0xa8] sm:$0xff]
    %v68 = vld [vmem:[#allocation5 + $0xb0] sm:$0xff]
    %v69 = vld [vmem:[#allocation5 + $0xb8] sm:$0xff]
    %v70 = vld [vmem:[#allocation5 + $0xc0] sm:$0xff]
    %v71 = vld [vmem:[#allocation5 + $0xc8] sm:$0xff]
    %v72 = vld [vmem:[#allocation5 + $0xd0] sm:$0xff]
    %v73 = vld [vmem:[#allocation5 + $0xd8] sm:$0xff]
    %v74 = vld [vmem:[#allocation5 + $0xe0] sm:$0xff]
    %v75 = vld [vmem:[#allocation5 + $0xe8] sm:$0xff]
    %v76 = vld [vmem:[#allocation5 + $0xf0] sm:$0xff]
    %v77 = vld [vmem:[#allocation5 + $0xf8] sm:$0xff]
    %v78 = vld [vmem:[#allocation5 + $0x100] sm:$0xff]
    %v79 = vld [vmem:[#allocation5 + $0x108] sm:$0xff]
    %v80 = vld [vmem:[#allocation5 + $0x110] sm:$0xff]
    %v81 = vld [vmem:[#allocation5 + $0x118] sm:$0xff]
    %v82 = vld [vmem:[#allocation5 + $0x120] sm:$0xff]
    %v83 = vld [vmem:[#allocation5 + $0x128] sm:$0xff]
    %v84 = vld [vmem:[#allocation5 + $0x130] sm:$0xff]
    %v85 = vld [vmem:[#allocation5 + $0x138] sm:$0xff]
    %v86 = vld [vmem:[#allocation5 + $0x140] sm:$0xff]
    %v87 = vld [vmem:[#allocation5 + $0x148] sm:$0xff]
    %v88 = vld [vmem:[#allocation5 + $0x150] sm:$0xff]
    %v89 = vld [vmem:[#allocation5 + $0x158] sm:$0xff]
    %v90 = vld [vmem:[#allocation5 + $0x160] sm:$0xff]
    %v91 = vld [vmem:[#allocation5 + $0x168] sm:$0xff]
    %v92 = vld [vmem:[#allocation5 + $0x170] sm:$0xff]
    %v93 = vld [vmem:[#allocation5 + $0x178] sm:$0xff]
    %v94 = vld [vmem:[#allocation5 + $0x180] sm:$0xff]
    %v95 = vld [vmem:[#allocation5 + $0x188] sm:$0xff]
    %v96 = vld [vmem:[#allocation5 + $0x190] sm:$0xff]
    %v97 = vld [vmem:[#allocation5 + $0x198] sm:$0xff]
    %v98 = vld [vmem:[#allocation5 + $0x1a0] sm:$0xff]
    %v99 = vld [vmem:[#allocation5 + $0x1a8] sm:$0xff]
    %v100 = vld [vmem:[#allocation5 + $0x1b0] sm:$0xff]
    %v101 = vld [vmem:[#allocation5 + $0x1b8] sm:$0xff]
    %v102 = vld [vmem:[#allocation5 + $0x1c0] sm:$0xff]
    %v103 = vld [vmem:[#allocation5 + $0x1c8] sm:$0xff]
    %v104 = vld [vmem:[#allocation5 + $0x1d0] sm:$0xff]
    %v105 = vld [vmem:[#allocation5 + $0x1d8] sm:$0xff]
    %v106 = vld [vmem:[#allocation5 + $0x1e0] sm:$0xff]
    %v107 = vld [vmem:[#allocation5 + $0x1e8] sm:$0xff]
    %v108 = vld [vmem:[#allocation5 + $0x1f0] sm:$0xff]
    %v109 = vld [vmem:[#allocation5 + $0x1f8] sm:$0xff]
    %v111 = vcombine.high %v45, %v45
    %v113 = vunpack.c.l.s4 1966171168
    %v114 = vunpack.c.0.s8 %v113
    %v115 = vlaneseq
    %v116 = vshrl.u32 %v115, 7
    %v117 = vsub.s32 %v114, %v116
    %v118 = vrot.slane %v45, %v117
    %v120 = vunpack.c.l.s4 1966171168
    %v121 = vunpack.c.0.s8 %v120
    %v122 = vlaneseq
    %v123 = vshrl.u32 %v122, 7
    %v124 = vsub.s32 %v121, %v123
    %v125 = vrot.slane %v111, %v124
    %v126 = vcombine.high %v118, %v118
    %v127 = vcombine.high %v125, %v125
    %v129 = vunpack.c.l.s4 1966171168
    %v130 = vunpack.c.0.s8 %v129
    %v131 = vlaneseq
    %v132 = vshrl.u32 %v131, 7
    %v133 = vsub.s32 %v130, %v132
    %v134 = vrot.slane %v118, %v133
    %v136 = vunpack.c.l.s4 1966171168
    %v137 = vunpack.c.0.s8 %v136
    %v138 = vlaneseq
    %v139 = vshrl.u32 %v138, 7
    %v140 = vsub.s32 %v137, %v139
    %v141 = vrot.slane %v125, %v140
    %v143 = vunpack.c.l.s4 1966171168
    %v144 = vunpack.c.0.s8 %v143
    %v145 = vlaneseq
    %v146 = vshrl.u32 %v145, 7
    %v147 = vsub.s32 %v144, %v146
    %v148 = vrot.slane %v126, %v147
    %v150 = vunpack.c.l.s4 1966171168
    %v151 = vunpack.c.0.s8 %v150
    %v152 = vlaneseq
    %v153 = vshrl.u32 %v152, 7
    %v154 = vsub.s32 %v151, %v153
    %v155 = vrot.slane %v127, %v154
    %v156 = vcombine.high %v134, %v134
    %v157 = vcombine.high %v141, %v141
    %v158 = vcombine.high %v148, %v148
    %v159 = vcombine.high %v155, %v155
    %v232 = vunpack.c.l.b16 %v46
    %v233 = vunpack.c.h.b16 %v46
    %v234 = vunpack.c.l.b16 %v47
    %v235 = vunpack.c.h.b16 %v47
    %v236 = vunpack.c.l.b16 %v48
    %v237 = vunpack.c.h.b16 %v48
    %v238 = vunpack.c.l.b16 %v49
    %v239 = vunpack.c.h.b16 %v49
    %v240 = vunpack.c.l.b16 %v50
    %v241 = vunpack.c.h.b16 %v50
    %v242 = vunpack.c.l.b16 %v51
    %v243 = vunpack.c.h.b16 %v51
    %v244 = vunpack.c.l.b16 %v52
    %v245 = vunpack.c.h.b16 %v52
    %v246 = vunpack.c.l.b16 %v53
    %v247 = vunpack.c.h.b16 %v53
    %v248 = vunpack.c.l.b16 %v54
    %v249 = vunpack.c.h.b16 %v54
    %v250 = vunpack.c.l.b16 %v55
    %v251 = vunpack.c.h.b16 %v55
    %v252 = vunpack.c.l.b16 %v56
    %v253 = vunpack.c.h.b16 %v56
    %v254 = vunpack.c.l.b16 %v57
    %v255 = vunpack.c.h.b16 %v57
    %v256 = vunpack.c.l.b16 %v58
    %v257 = vunpack.c.h.b16 %v58
    %v258 = vunpack.c.l.b16 %v59
    %v259 = vunpack.c.h.b16 %v59
    %v260 = vunpack.c.l.b16 %v60
    %v261 = vunpack.c.h.b16 %v60
    %v262 = vunpack.c.l.b16 %v61
    %v263 = vunpack.c.h.b16 %v61
    %v264 = vunpack.c.l.b16 %v62
    %v265 = vunpack.c.h.b16 %v62
    %v266 = vunpack.c.l.b16 %v63
    %v267 = vunpack.c.h.b16 %v63
    %v268 = vunpack.c.l.b16 %v64
    %v269 = vunpack.c.h.b16 %v64
    %v270 = vunpack.c.l.b16 %v65
    %v271 = vunpack.c.h.b16 %v65
    %v272 = vunpack.c.l.b16 %v66
    %v273 = vunpack.c.h.b16 %v66
    %v274 = vunpack.c.l.b16 %v67
    %v275 = vunpack.c.h.b16 %v67
    %v276 = vunpack.c.l.b16 %v68
    %v277 = vunpack.c.h.b16 %v68
    %v278 = vunpack.c.l.b16 %v69
    %v279 = vunpack.c.h.b16 %v69
    %v280 = vunpack.c.l.b16 %v70
    %v281 = vunpack.c.h.b16 %v70
    %v282 = vunpack.c.l.b16 %v71
    %v283 = vunpack.c.h.b16 %v71
    %v284 = vunpack.c.l.b16 %v72
    %v285 = vunpack.c.h.b16 %v72
    %v286 = vunpack.c.l.b16 %v73
    %v287 = vunpack.c.h.b16 %v73
    %v288 = vunpack.c.l.b16 %v74
    %v289 = vunpack.c.h.b16 %v74
    %v290 = vunpack.c.l.b16 %v75
    %v291 = vunpack.c.h.b16 %v75
    %v292 = vunpack.c.l.b16 %v76
    %v293 = vunpack.c.h.b16 %v76
    %v294 = vunpack.c.l.b16 %v77
    %v295 = vunpack.c.h.b16 %v77
    %v296 = vunpack.c.l.b16 %v78
    %v297 = vunpack.c.h.b16 %v78
    %v298 = vunpack.c.l.b16 %v79
    %v299 = vunpack.c.h.b16 %v79
    %v300 = vunpack.c.l.b16 %v80
    %v301 = vunpack.c.h.b16 %v80
    %v302 = vunpack.c.l.b16 %v81
    %v303 = vunpack.c.h.b16 %v81
    %v304 = vunpack.c.l.b16 %v82
    %v305 = vunpack.c.h.b16 %v82
    %v306 = vunpack.c.l.b16 %v83
    %v307 = vunpack.c.h.b16 %v83
    %v308 = vunpack.c.l.b16 %v84
    %v309 = vunpack.c.h.b16 %v84
    %v310 = vunpack.c.l.b16 %v85
    %v311 = vunpack.c.h.b16 %v85
    %v312 = vunpack.c.l.b16 %v86
    %v313 = vunpack.c.h.b16 %v86
    %v314 = vunpack.c.l.b16 %v87
    %v315 = vunpack.c.h.b16 %v87
    %v316 = vunpack.c.l.b16 %v88
    %v317 = vunpack.c.h.b16 %v88
    %v318 = vunpack.c.l.b16 %v89
    %v319 = vunpack.c.h.b16 %v89
    %v320 = vunpack.c.l.b16 %v90
    %v321 = vunpack.c.h.b16 %v90
    %v322 = vunpack.c.l.b16 %v91
    %v323 = vunpack.c.h.b16 %v91
    %v324 = vunpack.c.l.b16 %v92
    %v325 = vunpack.c.h.b16 %v92
    %v326 = vunpack.c.l.b16 %v93
    %v327 = vunpack.c.h.b16 %v93
    %v328 = vunpack.c.l.b16 %v94
    %v329 = vunpack.c.h.b16 %v94
    %v330 = vunpack.c.l.b16 %v95
    %v331 = vunpack.c.h.b16 %v95
    %v332 = vunpack.c.l.b16 %v96
    %v333 = vunpack.c.h.b16 %v96
    %v334 = vunpack.c.l.b16 %v97
    %v335 = vunpack.c.h.b16 %v97
    %v336 = vunpack.c.l.b16 %v98
    %v337 = vunpack.c.h.b16 %v98
    %v338 = vunpack.c.l.b16 %v99
    %v339 = vunpack.c.h.b16 %v99
    %v340 = vunpack.c.l.b16 %v100
    %v341 = vunpack.c.h.b16 %v100
    %v342 = vunpack.c.l.b16 %v101
    %v343 = vunpack.c.h.b16 %v101
    %v344 = vunpack.c.l.b16 %v102
    %v345 = vunpack.c.h.b16 %v102
    %v346 = vunpack.c.l.b16 %v103
    %v347 = vunpack.c.h.b16 %v103
    %v348 = vunpack.c.l.b16 %v104
    %v349 = vunpack.c.h.b16 %v104
    %v350 = vunpack.c.l.b16 %v105
    %v351 = vunpack.c.h.b16 %v105
    %v352 = vunpack.c.l.b16 %v106
    %v353 = vunpack.c.h.b16 %v106
    %v354 = vunpack.c.l.b16 %v107
    %v355 = vunpack.c.h.b16 %v107
    %v356 = vunpack.c.l.b16 %v108
    %v357 = vunpack.c.h.b16 %v108
    %v358 = vunpack.c.l.b16 %v109
    %v359 = vunpack.c.h.b16 %v109
    %v360 = vpack.c.b16 %v240, %v232
    %v361 = vpack.c.b16 %v241, %v233
    %v362 = vpack.c.b16 %v242, %v234
    %v363 = vpack.c.b16 %v243, %v235
    %v364 = vpack.c.b16 %v244, %v236
    %v365 = vpack.c.b16 %v245, %v237
    %v366 = vpack.c.b16 %v246, %v238
    %v367 = vpack.c.b16 %v247, %v239
    %v368 = vpack.c.b16 %v256, %v248
    %v369 = vpack.c.b16 %v257, %v249
    %v370 = vpack.c.b16 %v258, %v250
    %v371 = vpack.c.b16 %v259, %v251
    %v372 = vpack.c.b16 %v260, %v252
    %v373 = vpack.c.b16 %v261, %v253
    %v374 = vpack.c.b16 %v262, %v254
    %v375 = vpack.c.b16 %v263, %v255
    %v376 = vpack.c.b16 %v272, %v264
    %v377 = vpack.c.b16 %v273, %v265
    %v378 = vpack.c.b16 %v274, %v266
    %v379 = vpack.c.b16 %v275, %v267
    %v380 = vpack.c.b16 %v276, %v268
    %v381 = vpack.c.b16 %v277, %v269
    %v382 = vpack.c.b16 %v278, %v270
    %v383 = vpack.c.b16 %v279, %v271
    %v384 = vpack.c.b16 %v288, %v280
    %v385 = vpack.c.b16 %v289, %v281
    %v386 = vpack.c.b16 %v290, %v282
    %v387 = vpack.c.b16 %v291, %v283
    %v388 = vpack.c.b16 %v292, %v284
    %v389 = vpack.c.b16 %v293, %v285
    %v390 = vpack.c.b16 %v294, %v286
    %v391 = vpack.c.b16 %v295, %v287
    %v392 = vpack.c.b16 %v304, %v296
    %v393 = vpack.c.b16 %v305, %v297
    %v394 = vpack.c.b16 %v306, %v298
    %v395 = vpack.c.b16 %v307, %v299
    %v396 = vpack.c.b16 %v308, %v300
    %v397 = vpack.c.b16 %v309, %v301
    %v398 = vpack.c.b16 %v310, %v302
    %v399 = vpack.c.b16 %v311, %v303
    %v400 = vpack.c.b16 %v320, %v312
    %v401 = vpack.c.b16 %v321, %v313
    %v402 = vpack.c.b16 %v322, %v314
    %v403 = vpack.c.b16 %v323, %v315
    %v404 = vpack.c.b16 %v324, %v316
    %v405 = vpack.c.b16 %v325, %v317
    %v406 = vpack.c.b16 %v326, %v318
    %v407 = vpack.c.b16 %v327, %v319
    %v408 = vpack.c.b16 %v336, %v328
    %v409 = vpack.c.b16 %v337, %v329
    %v410 = vpack.c.b16 %v338, %v330
    %v411 = vpack.c.b16 %v339, %v331
    %v412 = vpack.c.b16 %v340, %v332
    %v413 = vpack.c.b16 %v341, %v333
    %v414 = vpack.c.b16 %v342, %v334
    %v415 = vpack.c.b16 %v343, %v335
    %v416 = vpack.c.b16 %v352, %v344
    %v417 = vpack.c.b16 %v353, %v345
    %v418 = vpack.c.b16 %v354, %v346
    %v419 = vpack.c.b16 %v355, %v347
    %v420 = vpack.c.b16 %v356, %v348
    %v421 = vpack.c.b16 %v357, %v349
    %v422 = vpack.c.b16 %v358, %v350
    %v423 = vpack.c.b16 %v359, %v351
    %488 = vmatprep.subr.bf16.mxu0 %v361
    %489 = vmatpush1.bf16.xpose.msra.mxu0 %v360
    %490 = vmatprep.subr.bf16.mxu0 %v369
    %491 = vmatpush1.bf16.xpose.msra.mxu0 %v368
    %492 = vmatprep.subr.bf16.mxu0 %v377
    %493 = vmatpush1.bf16.xpose.msra.mxu0 %v376
    %494 = vmatprep.subr.bf16.mxu0 %v385
    %495 = vmatpush1.bf16.xpose.msra.mxu0 %v384
    %496 = vmatprep.subr.bf16.mxu0 %v393
    %497 = vmatpush1.bf16.xpose.msra.mxu0 %v392
    %498 = vmatprep.subr.bf16.mxu0 %v401
    %499 = vmatpush1.bf16.xpose.msra.mxu0 %v400
    %500 = vmatprep.subr.bf16.mxu0 %v409
    %501 = vmatpush1.bf16.xpose.msra.mxu0 %v408
    %502 = vmatprep.subr.bf16.mxu0 %v417
    %503 = vmatpush1.bf16.xpose.msra.mxu0 %v416
    %504 = vmatprep.subr.bf16.mxu0 0
    %505 = vmatpush1.bf16.xpose.msra.mxu0 0
    %506 = vmatprep.subr.bf16.mxu0 0
    %507 = vmatpush1.bf16.xpose.msra.mxu0 0
    %508 = vmatprep.subr.bf16.mxu0 0
    %509 = vmatpush1.bf16.xpose.msra.mxu0 0
    %510 = vmatprep.subr.bf16.mxu0 0
    %511 = vmatpush1.bf16.xpose.msra.mxu0 0
    %512 = vmatprep.subr.bf16.mxu0 0
    %513 = vmatpush1.bf16.xpose.msra.mxu0 0
    %514 = vmatprep.subr.bf16.mxu0 0
    %515 = vmatpush1.bf16.xpose.msra.mxu0 0
    %516 = vmatprep.subr.bf16.mxu0 0
    %517 = vmatpush1.bf16.xpose.msra.mxu0 0
    %518 = vmatprep.subr.bf16.mxu0 0
    %519 = vmatpush1.bf16.xpose.msra.mxu0 0
    %520 = vmatprep.mubr.bf16.mxu0 %v148
    %521 = vmatmul.mubr.bf16.gmra.mrb[0].mxu0 %v134
    %v522 = vpop.f32.mrb[0].mxu0
    %v523 = vadd.f32 0.0, %v522
    %v524 = vpop.f32.mrb[0].mxu0
    %v525 = vpop.f32.mrb[0].mxu0
    %v526 = vpop.f32.mrb[0].mxu0
    %527 = vdwg.mxu0
    %528 = vmatprep.subr.bf16.mxu0 %v363
    %529 = vmatpush1.bf16.xpose.msra.mxu0 %v362
    %530 = vmatprep.subr.bf16.mxu0 %v371
    %531 = vmatpush1.bf16.xpose.msra.mxu0 %v370
    %532 = vmatprep.subr.bf16.mxu0 %v379
    %533 = vmatpush1.bf16.xpose.msra.mxu0 %v378
    %534 = vmatprep.subr.bf16.mxu0 %v387
    %535 = vmatpush1.bf16.xpose.msra.mxu0 %v386
    %536 = vmatprep.subr.bf16.mxu0 %v395
    %537 = vmatpush1.bf16.xpose.msra.mxu0 %v394
    %538 = vmatprep.subr.bf16.mxu0 %v403
    %539 = vmatpush1.bf16.xpose.msra.mxu0 %v402
    %540 = vmatprep.subr.bf16.mxu0 %v411
    %541 = vmatpush1.bf16.xpose.msra.mxu0 %v410
    %542 = vmatprep.subr.bf16.mxu0 %v419
    %543 = vmatpush1.bf16.xpose.msra.mxu0 %v418
    %544 = vmatprep.subr.bf16.mxu0 0
    %545 = vmatpush1.bf16.xpose.msra.mxu0 0
    %546 = vmatprep.subr.bf16.mxu0 0
    %547 = vmatpush1.bf16.xpose.msra.mxu0 0
    %548 = vmatprep.subr.bf16.mxu0 0
    %549 = vmatpush1.bf16.xpose.msra.mxu0 0
    %550 = vmatprep.subr.bf16.mxu0 0
    %551 = vmatpush1.bf16.xpose.msra.mxu0 0
    %552 = vmatprep.subr.bf16.mxu0 0
    %553 = vmatpush1.bf16.xpose.msra.mxu0 0
    %554 = vmatprep.subr.bf16.mxu0 0
    %555 = vmatpush1.bf16.xpose.msra.mxu0 0
    %556 = vmatprep.subr.bf16.mxu0 0
    %557 = vmatpush1.bf16.xpose.msra.mxu0 0
    %558 = vmatprep.subr.bf16.mxu0 0
    %559 = vmatpush1.bf16.xpose.msra.mxu0 0
    %560 = vmatprep.mubr.bf16.mxu0 %v158
    %561 = vmatmul.mubr.bf16.gmra.mrb[0].mxu0 %v156
    %v562 = vpop.f32.mrb[0].mxu0
    %v563 = vadd.f32 %v523, %v562
    %v564 = vpop.f32.mrb[0].mxu0
    %v565 = vpop.f32.mrb[0].mxu0
    %v566 = vpop.f32.mrb[0].mxu0
    %567 = vdwg.mxu0
    %568 = vmatprep.subr.bf16.mxu0 %v365
    %569 = vmatpush1.bf16.xpose.msra.mxu0 %v364
    %570 = vmatprep.subr.bf16.mxu0 %v373
    %571 = vmatpush1.bf16.xpose.msra.mxu0 %v372
    %572 = vmatprep.subr.bf16.mxu0 %v381
    %573 = vmatpush1.bf16.xpose.msra.mxu0 %v380
    %574 = vmatprep.subr.bf16.mxu0 %v389
    %575 = vmatpush1.bf16.xpose.msra.mxu0 %v388
    %576 = vmatprep.subr.bf16.mxu0 %v397
    %577 = vmatpush1.bf16.xpose.msra.mxu0 %v396
    %578 = vmatprep.subr.bf16.mxu0 %v405
    %579 = vmatpush1.bf16.xpose.msra.mxu0 %v404
    %580 = vmatprep.subr.bf16.mxu0 %v413
    %581 = vmatpush1.bf16.xpose.msra.mxu0 %v412
    %582 = vmatprep.subr.bf16.mxu0 %v421
    %583 = vmatpush1.bf16.xpose.msra.mxu0 %v420
    %584 = vmatprep.subr.bf16.mxu0 0
    %585 = vmatpush1.bf16.xpose.msra.mxu0 0
    %586 = vmatprep.subr.bf16.mxu0 0
    %587 = vmatpush1.bf16.xpose.msra.mxu0 0
    %588 = vmatprep.subr.bf16.mxu0 0
    %589 = vmatpush1.bf16.xpose.msra.mxu0 0
    %590 = vmatprep.subr.bf16.mxu0 0
    %591 = vmatpush1.bf16.xpose.msra.mxu0 0
    %592 = vmatprep.subr.bf16.mxu0 0
    %593 = vmatpush1.bf16.xpose.msra.mxu0 0
    %594 = vmatprep.subr.bf16.mxu0 0
    %595 = vmatpush1.bf16.xpose.msra.mxu0 0
    %596 = vmatprep.subr.bf16.mxu0 0
    %597 = vmatpush1.bf16.xpose.msra.mxu0 0
    %598 = vmatprep.subr.bf16.mxu0 0
    %599 = vmatpush1.bf16.xpose.msra.mxu0 0
    %600 = vmatprep.mubr.bf16.mxu0 %v155
    %601 = vmatmul.mubr.bf16.gmra.mrb[0].mxu0 %v141
    %v602 = vpop.f32.mrb[0].mxu0
    %v603 = vadd.f32 %v563, %v602
    %v604 = vpop.f32.mrb[0].mxu0
    %v605 = vpop.f32.mrb[0].mxu0
    %v606 = vpop.f32.mrb[0].mxu0
    %607 = vdwg.mxu0
    %608 = vmatprep.subr.bf16.mxu0 %v367
    %609 = vmatpush1.bf16.xpose.msra.mxu0 %v366
    %610 = vmatprep.subr.bf16.mxu0 %v375
    %611 = vmatpush1.bf16.xpose.msra.mxu0 %v374
    %612 = vmatprep.subr.bf16.mxu0 %v383
    %613 = vmatpush1.bf16.xpose.msra.mxu0 %v382
    %614 = vmatprep.subr.bf16.mxu0 %v391
    %615 = vmatpush1.bf16.xpose.msra.mxu0 %v390
    %616 = vmatprep.subr.bf16.mxu0 %v399
    %617 = vmatpush1.bf16.xpose.msra.mxu0 %v398
    %618 = vmatprep.subr.bf16.mxu0 %v407
    %619 = vmatpush1.bf16.xpose.msra.mxu0 %v406
    %620 = vmatprep.subr.bf16.mxu0 %v415
    %621 = vmatpush1.bf16.xpose.msra.mxu0 %v414
    %622 = vmatprep.subr.bf16.mxu0 %v423
    %623 = vmatpush1.bf16.xpose.msra.mxu0 %v422
    %624 = vmatprep.subr.bf16.mxu0 0
    %625 = vmatpush1.bf16.xpose.msra.mxu0 0
    %626 = vmatprep.subr.bf16.mxu0 0
    %627 = vmatpush1.bf16.xpose.msra.mxu0 0
    %628 = vmatprep.subr.bf16.mxu0 0
    %629 = vmatpush1.bf16.xpose.msra.mxu0 0
    %630 = vmatprep.subr.bf16.mxu0 0
    %631 = vmatpush1.bf16.xpose.msra.mxu0 0
    %632 = vmatprep.subr.bf16.mxu0 0
    %633 = vmatpush1.bf16.xpose.msra.mxu0 0
    %634 = vmatprep.subr.bf16.mxu0 0
    %635 = vmatpush1.bf16.xpose.msra.mxu0 0
    %636 = vmatprep.subr.bf16.mxu0 0
    %637 = vmatpush1.bf16.xpose.msra.mxu0 0
    %638 = vmatprep.subr.bf16.mxu0 0
    %639 = vmatpush1.bf16.xpose.msra.mxu0 0
    %640 = vmatprep.mubr.bf16.mxu0 %v159
    %641 = vmatmul.mubr.bf16.gmra.mrb[0].mxu0 %v157
    %v642 = vpop.f32.mrb[0].mxu0
    %v643 = vadd.f32 %v603, %v642
    %v644 = vpop.f32.mrb[0].mxu0
    %v645 = vpop.f32.mrb[0].mxu0
    %v646 = vpop.f32.mrb[0].mxu0
    %647 = vdwg.mxu0
    %v648 = vunpack.c.l.bf16 %v45
    %v649 = vunpack.c.h.bf16 %v45
    %v650 = vmul.f32 %v648, %v648
    %v651 = vmul.f32 %v649, %v649
    %v654 = vcombine.high %v650, %v650
    %v656 = vunpack.c.l.s4 1983009808
    %v657 = vunpack.c.0.s8 %v656
    %v658 = vlaneseq
    %v659 = vshrl.u32 %v658, 7
    %v660 = vsub.s32 %v657, %v659
    %v661 = vrot.slane %v650, %v660
    %v663 = vunpack.c.l.s4 1983009808
    %v664 = vunpack.c.0.s8 %v663
    %v665 = vlaneseq
    %v666 = vshrl.u32 %v665, 7
    %v667 = vsub.s32 %v664, %v666
    %v668 = vrot.slane %v654, %v667
    %v669 = vcombine.high %v661, %v661
    %v670 = vcombine.high %v668, %v668
    %v671 = vcombine.high %v651, %v651
    %v673 = vunpack.c.l.s4 1983009808
    %v674 = vunpack.c.0.s8 %v673
    %v675 = vlaneseq
    %v676 = vshrl.u32 %v675, 7
    %v677 = vsub.s32 %v674, %v676
    %v678 = vrot.slane %v651, %v677
    %v680 = vunpack.c.l.s4 1983009808
    %v681 = vunpack.c.0.s8 %v680
    %v682 = vlaneseq
    %v683 = vshrl.u32 %v682, 7
    %v684 = vsub.s32 %v681, %v683
    %v685 = vrot.slane %v671, %v684
    %v686 = vcombine.high %v678, %v678
    %v687 = vcombine.high %v685, %v685
    %vm696 = vcmask 1041408
    %v697 = vsel %vm696, %v661, 0.0
    %v698 = vsel %vm696, %v669, 0.0
    %v699 = vadd.f32 %v697, %v698
    %v700 = vsel %vm696, %v668, 0.0
    %v701 = vadd.f32 %v699, %v700
    %v702 = vsel %vm696, %v670, 0.0
    %v703 = vadd.f32 %v701, %v702
    %v704 = vsel %vm696, %v678, 0.0
    %v705 = vadd.f32 %v703, %v704
    %v706 = vsel %vm696, %v686, 0.0
    %v707 = vadd.f32 %v705, %v706
    %v708 = vsel %vm696, %v685, 0.0
    %v709 = vadd.f32 %v707, %v708
    %v710 = vsel %vm696, %v687, 0.0
    %v711 = vadd.f32 %v709, %v710
    %712 = vadd.xlane.f32.xlu0 %v711
    %v713 = vpop.xlane.xlu0 %712
    %v714 = vrsqrt.pop %v713
    %v715 = vmul.f32 %v713, %v714
    %vm716 = vcmp.eq.f32.partialorder %v713, inf
    %v717 = vsel %vm716, %v713, %v715
    %vm718 = vcmp.eq.f32.partialorder %v713, 0.0
    %v719 = vand.u32 %v713, 2147483648
    %v720 = vsel %vm718, %v719, %v717
    %v721 = vld [vmem:[%s2] sm:$0x1]
    %v723 = vlaneseq
    %v724 = vshrl.u32 %v723, 7
    %v725 = vsub.s32 0, %v724
    %v726 = vrot.slane %v721, %v725
    %v728 = vmul.f32 %v720, %v726
    %v729 = vmax.f32 %v728, 1e-08
    %v730 = vrcp.pop %v729
    %v731 = vmul.f32 %v643, %v730
    %v732 = vsel %vm696, %v731, -inf
    %733 = vmax.xlane.f32.xlu0 %v732
    %v734 = vpop.xlane.xlu0 %733
    %v735 = vsub.f32 %v731, %v734
    %v736 = vmul.f32 %v735, 1.442695
    %v737 = vpow.pop %v736
    %v738 = vsel %vm696, %v737, 0.0
    %739 = vadd.xlane.f32.xlu0 %v738
    %v740 = vpop.xlane.xlu0 %739
    %v741 = vrcp.pop %v740
    %v742 = vmul.f32 %v737, %v741
    %v743 = vsub.f32 %v742, 0.0078125
    %v744 = vmax.f32 %v743, 0.0
    %v745 = vmul.f32 %v744, %v742
    %v746 = vand.u32 2147483647, %v743
    %v747 = vadd.f32 %v746, 1e-12
    %v748 = vrcp.pop %v747
    %v749 = vmul.f32 %v745, %v748
    %v750 = vsel %vm696, %v749, 0.0
    %751 = vadd.xlane.f32.xlu0 %v750
    %v752 = vpop.xlane.xlu0 %751
    %v753 = vmax.f32 %v752, 1e-12
    %v754 = vrcp.pop %v753
    %v755 = vmul.f32 %v749, %v754
    %756 = vst [vmem:[#allocation8] sm:$0x3] %v755
    %v757 = vpack.c.bf16 %v755, %v755
    %758 = vmatprep.subr.bf16.mxu0 %v361
    %759 = vmatpush1.bf16.msra.mxu0 %v360
    %760 = vmatprep.subr.bf16.mxu0 %v369
    %761 = vmatpush1.bf16.msra.mxu0 %v368
    %762 = vmatprep.subr.bf16.mxu0 %v377
    %763 = vmatpush1.bf16.msra.mxu0 %v376
    %764 = vmatprep.subr.bf16.mxu0 %v385
    %765 = vmatpush1.bf16.msra.mxu0 %v384
    %766 = vmatprep.subr.bf16.mxu0 %v393
    %767 = vmatpush1.bf16.msra.mxu0 %v392
    %768 = vmatprep.subr.bf16.mxu0 %v401
    %769 = vmatpush1.bf16.msra.mxu0 %v400
    %770 = vmatprep.subr.bf16.mxu0 %v409
    %771 = vmatpush1.bf16.msra.mxu0 %v408
    %772 = vmatprep.subr.bf16.mxu0 %v417
    %773 = vmatpush1.bf16.msra.mxu0 %v416
    %774 = vmatprep.subr.bf16.mxu0 0
    %775 = vmatpush1.bf16.msra.mxu0 0
    %776 = vmatprep.subr.bf16.mxu0 0
    %777 = vmatpush1.bf16.msra.mxu0 0
    %778 = vmatprep.subr.bf16.mxu0 0
    %779 = vmatpush1.bf16.msra.mxu0 0
    %780 = vmatprep.subr.bf16.mxu0 0
    %781 = vmatpush1.bf16.msra.mxu0 0
    %782 = vmatprep.subr.bf16.mxu0 0
    %783 = vmatpush1.bf16.msra.mxu0 0
    %784 = vmatprep.subr.bf16.mxu0 0
    %785 = vmatpush1.bf16.msra.mxu0 0
    %786 = vmatprep.subr.bf16.mxu0 0
    %787 = vmatpush1.bf16.msra.mxu0 0
    %788 = vmatprep.subr.bf16.mxu0 0
    %789 = vmatpush1.bf16.msra.mxu0 0
    %790 = vmatprep.mubr.bf16.mxu0 0
    %791 = vmatmul.mubr.bf16.gmra.mrb[0].mxu0 %v757
    %v792 = vpop.f32.mrb[0].mxu0
    %v793 = vadd.f32 0.0, %v792
    %v794 = vpop.f32.mrb[0].mxu0
    %v795 = vadd.f32 0.0, %v794
    %v796 = vpop.f32.mrb[0].mxu0
    %v797 = vpop.f32.mrb[0].mxu0
    %798 = vdwg.mxu0
    %799 = vmatprep.subr.bf16.mxu0 %v363
    %800 = vmatpush1.bf16.msra.mxu0 %v362
    %801 = vmatprep.subr.bf16.mxu0 %v371
    %802 = vmatpush1.bf16.msra.mxu0 %v370
    %803 = vmatprep.subr.bf16.mxu0 %v379
    %804 = vmatpush1.bf16.msra.mxu0 %v378
    %805 = vmatprep.subr.bf16.mxu0 %v387
    %806 = vmatpush1.bf16.msra.mxu0 %v386
    %807 = vmatprep.subr.bf16.mxu0 %v395
    %808 = vmatpush1.bf16.msra.mxu0 %v394
    %809 = vmatprep.subr.bf16.mxu0 %v403
    %810 = vmatpush1.bf16.msra.mxu0 %v402
    %811 = vmatprep.subr.bf16.mxu0 %v411
    %812 = vmatpush1.bf16.msra.mxu0 %v410
    %813 = vmatprep.subr.bf16.mxu0 %v419
    %814 = vmatpush1.bf16.msra.mxu0 %v418
    %815 = vmatprep.subr.bf16.mxu0 0
    %816 = vmatpush1.bf16.msra.mxu0 0
    %817 = vmatprep.subr.bf16.mxu0 0
    %818 = vmatpush1.bf16.msra.mxu0 0
    %819 = vmatprep.subr.bf16.mxu0 0
    %820 = vmatpush1.bf16.msra.mxu0 0
    %821 = vmatprep.subr.bf16.mxu0 0
    %822 = vmatpush1.bf16.msra.mxu0 0
    %823 = vmatprep.subr.bf16.mxu0 0
    %824 = vmatpush1.bf16.msra.mxu0 0
    %825 = vmatprep.subr.bf16.mxu0 0
    %826 = vmatpush1.bf16.msra.mxu0 0
    %827 = vmatprep.subr.bf16.mxu0 0
    %828 = vmatpush1.bf16.msra.mxu0 0
    %829 = vmatprep.subr.bf16.mxu0 0
    %830 = vmatpush1.bf16.msra.mxu0 0
    %831 = vmatprep.mubr.bf16.mxu0 0
    %832 = vmatmul.mubr.bf16.gmra.mrb[0].mxu0 %v757
    %v833 = vpop.f32.mrb[0].mxu0
    %v834 = vadd.f32 0.0, %v833
    %v835 = vpop.f32.mrb[0].mxu0
    %v836 = vadd.f32 0.0, %v835
    %v837 = vpop.f32.mrb[0].mxu0
    %v838 = vpop.f32.mrb[0].mxu0
    %839 = vdwg.mxu0
    %840 = vmatprep.subr.bf16.mxu0 %v365
    %841 = vmatpush1.bf16.msra.mxu0 %v364
    %842 = vmatprep.subr.bf16.mxu0 %v373
    %843 = vmatpush1.bf16.msra.mxu0 %v372
    %844 = vmatprep.subr.bf16.mxu0 %v381
    %845 = vmatpush1.bf16.msra.mxu0 %v380
    %846 = vmatprep.subr.bf16.mxu0 %v389
    %847 = vmatpush1.bf16.msra.mxu0 %v388
    %848 = vmatprep.subr.bf16.mxu0 %v397
    %849 = vmatpush1.bf16.msra.mxu0 %v396
    %850 = vmatprep.subr.bf16.mxu0 %v405
    %851 = vmatpush1.bf16.msra.mxu0 %v404
    %852 = vmatprep.subr.bf16.mxu0 %v413
    %853 = vmatpush1.bf16.msra.mxu0 %v412
    %854 = vmatprep.subr.bf16.mxu0 %v421
    %855 = vmatpush1.bf16.msra.mxu0 %v420
    %856 = vmatprep.subr.bf16.mxu0 0
    %857 = vmatpush1.bf16.msra.mxu0 0
    %858 = vmatprep.subr.bf16.mxu0 0
    %859 = vmatpush1.bf16.msra.mxu0 0
    %860 = vmatprep.subr.bf16.mxu0 0
    %861 = vmatpush1.bf16.msra.mxu0 0
    %862 = vmatprep.subr.bf16.mxu0 0
    %863 = vmatpush1.bf16.msra.mxu0 0
    %864 = vmatprep.subr.bf16.mxu0 0
    %865 = vmatpush1.bf16.msra.mxu0 0
    %866 = vmatprep.subr.bf16.mxu0 0
    %867 = vmatpush1.bf16.msra.mxu0 0
    %868 = vmatprep.subr.bf16.mxu0 0
    %869 = vmatpush1.bf16.msra.mxu0 0
    %870 = vmatprep.subr.bf16.mxu0 0
    %871 = vmatpush1.bf16.msra.mxu0 0
    %872 = vmatprep.mubr.bf16.mxu0 0
    %873 = vmatmul.mubr.bf16.gmra.mrb[0].mxu0 %v757
    %v874 = vpop.f32.mrb[0].mxu0
    %v875 = vadd.f32 0.0, %v874
    %v876 = vpop.f32.mrb[0].mxu0
    %v877 = vadd.f32 0.0, %v876
    %v878 = vpop.f32.mrb[0].mxu0
    %v879 = vpop.f32.mrb[0].mxu0
    %880 = vdwg.mxu0
    %881 = vmatprep.subr.bf16.mxu0 %v367
    %882 = vmatpush1.bf16.msra.mxu0 %v366
    %883 = vmatprep.subr.bf16.mxu0 %v375
    %884 = vmatpush1.bf16.msra.mxu0 %v374
    %885 = vmatprep.subr.bf16.mxu0 %v383
    %886 = vmatpush1.bf16.msra.mxu0 %v382
    %887 = vmatprep.subr.bf16.mxu0 %v391
    %888 = vmatpush1.bf16.msra.mxu0 %v390
    %889 = vmatprep.subr.bf16.mxu0 %v399
    %890 = vmatpush1.bf16.msra.mxu0 %v398
    %891 = vmatprep.subr.bf16.mxu0 %v407
    %892 = vmatpush1.bf16.msra.mxu0 %v406
    %893 = vmatprep.subr.bf16.mxu0 %v415
    %894 = vmatpush1.bf16.msra.mxu0 %v414
    %895 = vmatprep.subr.bf16.mxu0 %v423
    %896 = vmatpush1.bf16.msra.mxu0 %v422
    %897 = vmatprep.subr.bf16.mxu0 0
    %898 = vmatpush1.bf16.msra.mxu0 0
    %899 = vmatprep.subr.bf16.mxu0 0
    %900 = vmatpush1.bf16.msra.mxu0 0
    %901 = vmatprep.subr.bf16.mxu0 0
    %902 = vmatpush1.bf16.msra.mxu0 0
    %903 = vmatprep.subr.bf16.mxu0 0
    %904 = vmatpush1.bf16.msra.mxu0 0
    %905 = vmatprep.subr.bf16.mxu0 0
    %906 = vmatpush1.bf16.msra.mxu0 0
    %907 = vmatprep.subr.bf16.mxu0 0
    %908 = vmatpush1.bf16.msra.mxu0 0
    %909 = vmatprep.subr.bf16.mxu0 0
    %910 = vmatpush1.bf16.msra.mxu0 0
    %911 = vmatprep.subr.bf16.mxu0 0
    %912 = vmatpush1.bf16.msra.mxu0 0
    %913 = vmatprep.mubr.bf16.mxu0 0
    %914 = vmatmul.mubr.bf16.gmra.mrb[0].mxu0 %v757
    %v915 = vpop.f32.mrb[0].mxu0
    %v916 = vadd.f32 0.0, %v915
    %v917 = vpop.f32.mrb[0].mxu0
    %v918 = vadd.f32 0.0, %v917
    %v919 = vpop.f32.mrb[0].mxu0
    %v920 = vpop.f32.mrb[0].mxu0
    %921 = vdwg.mxu0
    %v930 = vcombine.low %v793, %v795
    %v931 = vcombine.low %v834, %v836
    %v933 = vunpack.c.l.s4 1983009808
    %v934 = vunpack.c.0.s8 %v933
    %v935 = vlaneseq
    %v936 = vshrl.u32 %v935, 7
    %v937 = vsub.s32 %v934, %v936
    %v938 = vrot.slane %v930, %v937
    %v940 = vunpack.c.l.s4 1983009808
    %v941 = vunpack.c.0.s8 %v940
    %v942 = vlaneseq
    %v943 = vshrl.u32 %v942, 7
    %v944 = vsub.s32 %v941, %v943
    %v945 = vrot.slane %v931, %v944
    %v946 = vcombine.low %v938, %v945
    %v947 = vcombine.low %v875, %v877
    %v948 = vcombine.low %v916, %v918
    %v950 = vunpack.c.l.s4 1983009808
    %v951 = vunpack.c.0.s8 %v950
    %v952 = vlaneseq
    %v953 = vshrl.u32 %v952, 7
    %v954 = vsub.s32 %v951, %v953
    %v955 = vrot.slane %v947, %v954
    %v957 = vunpack.c.l.s4 1983009808
    %v958 = vunpack.c.0.s8 %v957
    %v959 = vlaneseq
    %v960 = vshrl.u32 %v959, 7
    %v961 = vsub.s32 %v958, %v960
    %v962 = vrot.slane %v948, %v961
    %v963 = vcombine.low %v955, %v962
    %966 = vst [vmem:[#allocation7] sm:$0xff] %v946
    %967 = vst [vmem:[#allocation7 + $0x8] sm:$0xff] %v963
    // Predicated region
    $region22: #{tpu_custom_call.1} parent=1 // pred_check
      _
    $region23: #{tpu_custom_call.1} parent=1 // pred_check_branch
      %969 = sbr.rel (0) target = $region25
    $region24: #{tpu_custom_call.1} parent=1 // pred_region
      %s971 = ssub.s32 256, 256
      %972 = vsyncadd [#allocation4], %s971
      %s974 = sshll.u32 [#allocation7], 4
      %s975 = int_to_ptr.vmem [resolvable:$true] %s974
      %977 = dma.vmem_to_hbm [thread:$0]  %s975, 256, %s3, [#allocation4]
    $region25: #{tpu_custom_call.1} parent=1 // pred_fallthru
      _
    // Predicated region
    $region26: #{tpu_custom_call.1} parent=1 // pred_check
      _
    $region27: #{tpu_custom_call.1} parent=1 // pred_check_branch
      %979 = sbr.rel (0) target = $region29
    $region28: #{tpu_custom_call.1} parent=1 // pred_region
      %s981 = ssub.s32 32, 32
      %982 = vsyncadd [#allocation9], %s981
      %s984 = sshll.u32 [#allocation8], 4
      %s985 = int_to_ptr.vmem [resolvable:$true] %s984
      %987 = dma.vmem_to_hbm [thread:$0]  %s985, 32, %s4, [#allocation9]
    $region29: #{tpu_custom_call.1} parent=1 // pred_fallthru
      _
    // Predicated region
    $region30: #{tpu_custom_call.1} parent=1 // pred_check
      _
    $region31: #{tpu_custom_call.1} parent=1 // pred_check_branch
      %989 = sbr.rel (0) target = $region33
    $region32: #{tpu_custom_call.1} parent=1 // pred_region
      %990 = dma.done [#allocation4], 256
    $region33: #{tpu_custom_call.1} parent=1 // pred_fallthru
      _
    // Predicated region
    $region34: #{tpu_custom_call.1} parent=1 // pred_check
      _
    $region35: #{tpu_custom_call.1} parent=1 // pred_check_branch
      %992 = sbr.rel (0) target = $region37
    $region36: #{tpu_custom_call.1} parent=1 // pred_region
      %993 = dma.done [#allocation9], 32
    $region37: #{tpu_custom_call.1} parent=1 // pred_fallthru
      _
    %994 = vsyncpa [#allocation3], 1
    %995 = vsyncpa [#allocation6], 1
    %996 = vsyncpa [#allocation4], 1
    %997 = vsyncpa [#allocation9], 1

</llo_original>
